<compile_context>
chip_gen: v7x
topology: tpu7x:2x2x1
jax: 0.10.0
libtpu: 0.0.40
codegen_flags: <defaults>
</compile_context>

<pallas_src>
import functools

import jax
import jax.numpy as jnp
from jax import lax
from jax.experimental import pallas as pl
from jax.experimental.pallas import tpu as pltpu


def _round_up(x, m):
    return (x + m - 1) // m * m


def _policy_kernel(n_hidden, x_ref, w1_ref, b1_ref, *rest):
    # rest layout: [wh_ref, bh_ref] (only if n_hidden > 0), wo_ref, bo_ref, out_ref
    if n_hidden > 0:
        wh_ref, bh_ref, wo_ref, bo_ref, out_ref = rest
    else:
        wo_ref, bo_ref, out_ref = rest

    x = x_ref[...].astype(jnp.float32)                      # (TB, s_size)

    # ---- normalize_states (log part only; affine part folded into w1/b1) ----
    col = lax.broadcasted_iota(jnp.int32, x.shape, 1)
    is_log = col >= 2
    # guard the discarded branch of the select against log(<=0)
    f = jnp.where(is_log, jnp.log(jnp.where(is_log, x, 1.0)), x)

    def silu(z):
        # sigmoid via EUP exp + EUP approximate reciprocal (keeps VALU free)
        return z * pl.reciprocal(1.0 + jnp.exp(-z), approx=True)

    # ---- h1 ----
    w1 = w1_ref[...]
    h = jnp.dot(f.astype(w1.dtype), w1,
                preferred_element_type=jnp.float32) + b1_ref[...]
    h = silu(h)

    # ---- hidden stack (static unroll over stacked weights) ----
    for i in range(n_hidden):
        w = wh_ref[i]                                        # (H, H)
        h = jnp.dot(h.astype(w.dtype), w,
                    preferred_element_type=jnp.float32) + bh_ref[i]
        h = silu(h)

    # ---- output layer (lane-dense, padded cols carry -1e30 bias) ----
    wo = wo_ref[...]
    logits = jnp.dot(h.astype(wo.dtype), wo,
                     preferred_element_type=jnp.float32) + bo_ref[...]

    # ---- softmax(dim=-1), numerically stable ----
    m = jnp.max(logits, axis=-1, keepdims=True)
    e = jnp.exp(logits - m)
    inv = pl.reciprocal(jnp.sum(e, axis=-1, keepdims=True), approx=True)
    out_ref[...] = (e * inv).astype(out_ref.dtype)


def policy_ann_forward(state, params, w0, S0, *, block_batch=1024, use_bf16=False):
    """PolicyANN forward: normalize -> Linear+SiLU stack -> Linear -> softmax.

    state : (B, s_size) float32
    params: dict with 'w1','b1','wh' (list),'bh' (list),'wo','bo'
            (weights already transposed to [in, out])
    w0    : python float
    S0    : (output_size,) float32 array
    """
    B, s_size = state.shape
    S0 = jnp.asarray(S0, jnp.float32)
    output_size = S0.shape[0]
    H = params["w1"].shape[1]
    L = len(params["wh"])
    out_pad = _round_up(max(output_size, 128), 128)          # lane-dense output slab

    # ---- fold affine normalization into the first Linear ----
    # s_norm = f(x) * scale + offset, with f = [x0, x1, log(x2...)]
    scale = jnp.concatenate(
        [jnp.array([1.0, 1.0 / w0], jnp.float32),
         jnp.ones((output_size,), jnp.float32)])
    offset = jnp.concatenate(
        [jnp.array([0.0, -1.0], jnp.float32), -jnp.log(S0)])
    w1 = scale[:, None] * params["w1"]                       # (s_size, H)
    b1 = offset[None, :] @ params["w1"] + params["b1"]       # (1, H)

    # ---- pad output layer to 128 lanes; padded logits forced to -1e30 ----
    wo = jnp.zeros((H, out_pad), jnp.float32).at[:, :output_size].set(params["wo"])
    bo = jnp.full((1, out_pad), -1e30, jnp.float32).at[:, :output_size].set(params["bo"])

    w_dtype = jnp.bfloat16 if use_bf16 else jnp.float32
    w1 = w1.astype(w_dtype)
    wo = wo.astype(w_dtype)

    inputs = [None, w1, b1.astype(jnp.float32)]
    if L > 0:
        wh = jnp.stack(params["wh"], axis=0).astype(w_dtype)        # (L, H, H)
        bh = jnp.stack(params["bh"], axis=0).astype(jnp.float32)    # (L, 1, H)
        inputs += [wh, bh]
    inputs += [wo, bo]

    # ---- batch tiling (TB multiple of 8, pipelined across the grid) ----
    tb = min(_round_up(block_batch, 8), _round_up(B, 8))
    b_pad = _round_up(B, tb)
    x = state
    if b_pad != B:
        # pad with ones so log() in the dead rows stays finite (rows are sliced off)
        x = jnp.concatenate(
            [state, jnp.ones((b_pad - B, s_size), state.dtype)], axis=0)
    inputs[0] = x
    grid = (b_pad // tb,)

    in_specs = [
        pl.BlockSpec((tb, s_size), lambda i: (i, 0)),
        pl.BlockSpec((s_size, H), lambda i: (0, 0)),
        pl.BlockSpec((1, H), lambda i: (0, 0)),
    ]
    if L > 0:
        in_specs += [
            pl.BlockSpec((L, H, H), lambda i: (0, 0, 0)),
            pl.BlockSpec((L, 1, H), lambda i: (0, 0, 0)),
        ]
    in_specs += [
        pl.BlockSpec((H, out_pad), lambda i: (0, 0)),
        pl.BlockSpec((1, out_pad), lambda i: (0, 0)),
    ]
    out_specs = pl.BlockSpec((tb, out_pad), lambda i: (i, 0))

    # ---- VMEM-aware scoped limit (double-buffered tiles + resident weights) ----
    weight_bytes = sum(int(a.size) * a.dtype.itemsize for a in inputs[1:])
    tile_bytes = tb * s_size * 4 + tb * out_pad * 4          # x tile + out tile
    act_bytes = 4 * tb * max(H, out_pad) * 4                 # intermediates headroom
    vmem_est = 2 * (tile_bytes + weight_bytes) + act_bytes
    vmem_limit = int(min(64 * 1024 * 1024, max(32 * 1024 * 1024, 2 * vmem_est)))

    n_bytes = sum(int(a.size) * a.dtype.itemsize for a in inputs) + b_pad * out_pad * 4
    cost = pl.CostEstimate(
        flops=2 * b_pad * (s_size * H + L * H * H + H * out_pad),
        transcendentals=b_pad * ((s_size - 2) + (L + 1) * H + out_pad),
        bytes_accessed=int(n_bytes),
    )

    kernel = functools.partial(_policy_kernel, L)
    out = pl.pallas_call(
        kernel,
        out_shape=jax.ShapeDtypeStruct((b_pad, out_pad), jnp.float32),
        grid=grid,
        in_specs=in_specs,
        out_specs=out_specs,
        compiler_params=pltpu.CompilerParams(
            dimension_semantics=("parallel",),
            vmem_limit_bytes=vmem_limit),
        cost_estimate=cost,
    )(*inputs)
    return out[:B, :output_size]


def _xavier_uniform(key, out_features, in_features):
    # matches nn.init.xavier_uniform_ on a (out, in) Linear weight
    limit = (6.0 / (in_features + out_features)) ** 0.5
    return jax.random.uniform(key, (out_features, in_features),
                              minval=-limit, maxval=limit, dtype=jnp.float32)


def init_policy_params(key, s_size, hidden_size, output_size, n_layers):
    """Deterministic parameter init mirroring PolicyANN.__init__ shapes.
    Returns weights pre-transposed to [in, out] for the kernel."""
    keys = jax.random.split(key, n_layers + 1)
    params = {}
    w1 = _xavier_uniform(keys[0], hidden_size, s_size)
    params["w1"] = w1.T                                      # (s_size, hidden)
    params["b1"] = jnp.zeros((1, hidden_size), jnp.float32)

    params["wh"], params["bh"] = [], []
    for i in range(n_layers - 1):
        wh = _xavier_uniform(keys[1 + i], hidden_size, hidden_size)
        params["wh"].append(wh.T)                            # (hidden, hidden)
        params["bh"].append(jnp.zeros((1, hidden_size), jnp.float32))

    wo = _xavier_uniform(keys[n_layers], output_size, hidden_size)
    params["wo"] = wo.T                                      # (hidden, output)
    params["bo"] = jnp.zeros((1, output_size), jnp.float32)
    return params


def reference_forward(state, params, w0, S0):
    """Pure-JAX reference (mirrors the PyTorch module exactly)."""
    x = state.astype(jnp.float32)
    col1 = x[:, 1:2] / w0 - 1.0
    col_rest = jnp.log(x[:, 2:] / S0[None, :])
    s_norm = jnp.concatenate([x[:, 0:1], col1, col_rest], axis=-1)

    def silu(z):
        return z * jax.nn.sigmoid(z)

    h = silu(s_norm @ params["w1"] + params["b1"])
    for wh, bh in zip(params["wh"], params["bh"]):
        h = silu(h @ wh + bh)
    logits = h @ params["wo"] + params["bo"]
    return jax.nn.softmax(logits, axis=-1)


# TODO(synk): the Adam optimizer / StepLR scheduler in PolicyANN.__init__ are
# training-time state and are intentionally not part of the forward kernel.

if __name__ == "__main__":
    # Small, deterministic example consistent with the module:
    #   output_size = len(S0) = 4,  s_size = 2 + len(S0) = 6
    #   hidden_pi = 32, layers_pi = 2  (=> one extra hidden layer in h_n)
    B = 8
    output_size = 4
    s_size = 2 + output_size
    hidden_size = 32
    n_layers = 2

    key = jax.random.PRNGKey(0)
    k_params, k_state = jax.random.split(key)

    params = init_policy_params(k_params, s_size, hidden_size, output_size, n_layers)

    w0 = 100.0
    S0 = jnp.array([10.0, 20.0, 30.0, 40.0], dtype=jnp.float32)

    # Build a state tensor: feature 0 = time-like, feature 1 ~ wealth around w0,
    # features 2: strictly-positive prices (so log() is valid).
    u = jax.random.uniform(k_state, (B, s_size), dtype=jnp.float32)
    state = jnp.concatenate(
        [u[:, 0:1],                        # feature 0
         w0 * (0.5 + u[:, 1:2]),           # feature 1 (positive wealth)
         S0[None, :] * (0.5 + u[:, 2:])],  # features 2: (positive prices)
        axis=-1,
    )

    out = policy_ann_forward(state, params, w0, S0)
    out = jax.block_until_ready(out)

    ref = reference_forward(state, params, w0, S0)
    assert out.shape == (B, output_size)
    # tolerance loosened slightly because SiLU/softmax use the EUP approximate
    # reciprocal (pl.reciprocal(approx=True))
    assert jnp.allclose(out, ref, atol=2e-3, rtol=2e-3), "mismatch vs reference"
    assert jnp.allclose(jnp.sum(out, axis=-1), 1.0, atol=2e-3), "softmax rows must sum to ~1"

    print("KERNEL_OK")
</pallas_src>

<mosaic_0001>
module attributes {stable_mosaic.version = 11 : i64} {
  func.func @_policy_kernel(%arg0: i32, %arg1: memref<8x6xf32, #tpu.memory_space<vmem>>, %arg2: memref<6x32xf32, #tpu.memory_space<vmem>>, %arg3: memref<1x32xf32, #tpu.memory_space<vmem>>, %arg4: memref<1x32x32xf32, #tpu.memory_space<vmem>>, %arg5: memref<1x1x32xf32, #tpu.memory_space<vmem>>, %arg6: memref<32x128xf32, #tpu.memory_space<vmem>>, %arg7: memref<1x128xf32, #tpu.memory_space<vmem>>, %arg8: memref<8x128xf32, #tpu.memory_space<vmem>>) attributes {dimension_semantics = [#tpu.dimension_semantics<parallel>], iteration_bounds = array<i64: 1>, scalar_prefetch = 0 : i64, scratch_operands = 0 : i64, tpu.core_type = #tpu.core_type<tc>, window_params = [{transform_indices = @transform_0, window_bounds = array<i64: 8, 6>}, {pipeline_mode = #tpu.pipeline_mode<synchronous>, transform_indices = @transform_1, window_bounds = array<i64: 6, 32>}, {pipeline_mode = #tpu.pipeline_mode<synchronous>, transform_indices = @transform_2, window_bounds = array<i64: 1, 32>}, {pipeline_mode = #tpu.pipeline_mode<synchronous>, transform_indices = @transform_3, window_bounds = array<i64: 1, 32, 32>}, {pipeline_mode = #tpu.pipeline_mode<synchronous>, transform_indices = @transform_4, window_bounds = array<i64: 1, 1, 32>}, {pipeline_mode = #tpu.pipeline_mode<synchronous>, transform_indices = @transform_5, window_bounds = array<i64: 32, 128>}, {pipeline_mode = #tpu.pipeline_mode<synchronous>, transform_indices = @transform_6, window_bounds = array<i64: 1, 128>}, {transform_indices = @transform_7, window_bounds = array<i64: 8, 128>}]} {
    %c0 = arith.constant 0 : index
    %c0_0 = arith.constant 0 : index
    %0 = vector.load %arg1[%c0, %c0_0] : memref<8x6xf32, #tpu.memory_space<vmem>>, vector<8x6xf32>
    %1 = tpu.iota {dimensions = array<i32: 1>} : vector<8x6xi32>
    %c2_i32 = arith.constant 2 : i32
    %2 = vector.broadcast %c2_i32 : i32 to vector<8x6xi32>
    %3 = arith.cmpi sge, %1, %2 : vector<8x6xi32>
    %cst = arith.constant 1.000000e+00 : f32
    %4 = vector.broadcast %cst : f32 to vector<8x6xf32>
    %5 = arith.select %3, %0, %4 : vector<8x6xi1>, vector<8x6xf32>
    %6 = math.log %5 : vector<8x6xf32>
    %7 = arith.select %3, %6, %0 : vector<8x6xi1>, vector<8x6xf32>
    %c0_1 = arith.constant 0 : index
    %c0_2 = arith.constant 0 : index
    %8 = vector.load %arg2[%c0_1, %c0_2] : memref<6x32xf32, #tpu.memory_space<vmem>>, vector<6x32xf32>
    %cst_3 = arith.constant dense<0.000000e+00> : vector<8x32xf32>
    %9 = tpu.matmul %7, %8, %cst_3 {dimension_numbers = #tpu.dot_dimension_numbers<[1], [0], [0], [1], [0, 0, 1, 1], [], []>} : vector<8x6xf32>, vector<6x32xf32>, vector<8x32xf32> -> vector<8x32xf32>
    %c0_4 = arith.constant 0 : index
    %c0_5 = arith.constant 0 : index
    %10 = vector.load %arg3[%c0_4, %c0_5] : memref<1x32xf32, #tpu.memory_space<vmem>>, vector<1x32xf32>
    %11 = vector.broadcast %10 : vector<1x32xf32> to vector<8x32xf32>
    %12 = arith.addf %9, %11 : vector<8x32xf32>
    %cst_6 = arith.constant 0.000000e+00 : f32
    %13 = vector.broadcast %cst_6 : f32 to vector<8x32xf32>
    %14 = arith.subf %13, %12 : vector<8x32xf32>
    %15 = math.exp %14 : vector<8x32xf32>
    %cst_7 = arith.constant 1.000000e+00 : f32
    %16 = vector.broadcast %cst_7 : f32 to vector<8x32xf32>
    %17 = arith.addf %16, %15 : vector<8x32xf32>
    %18 = tpu.reciprocal %17 {approx = true} : vector<8x32xf32> -> vector<8x32xf32>
    %19 = arith.mulf %12, %18 : vector<8x32xf32>
    %c0_8 = arith.constant 0 : index
    %c0_9 = arith.constant 0 : index
    %c0_10 = arith.constant 0 : index
    %20 = vector.load %arg4[%c0_8, %c0_9, %c0_10] : memref<1x32x32xf32, #tpu.memory_space<vmem>>, vector<1x32x32xf32>
    %21 = vector.shape_cast %20 : vector<1x32x32xf32> to vector<32x32xf32>
    %cst_11 = arith.constant dense<0.000000e+00> : vector<8x32xf32>
    %22 = tpu.matmul %19, %21, %cst_11 {dimension_numbers = #tpu.dot_dimension_numbers<[1], [0], [0], [1], [0, 0, 1, 1], [], []>} : vector<8x32xf32>, vector<32x32xf32>, vector<8x32xf32> -> vector<8x32xf32>
    %c0_12 = arith.constant 0 : index
    %c0_13 = arith.constant 0 : index
    %c0_14 = arith.constant 0 : index
    %23 = vector.load %arg5[%c0_12, %c0_13, %c0_14] : memref<1x1x32xf32, #tpu.memory_space<vmem>>, vector<1x1x32xf32>
    %24 = vector.shape_cast %23 : vector<1x1x32xf32> to vector<1x32xf32>
    %25 = vector.broadcast %24 : vector<1x32xf32> to vector<8x32xf32>
    %26 = arith.addf %22, %25 : vector<8x32xf32>
    %cst_15 = arith.constant 0.000000e+00 : f32
    %27 = vector.broadcast %cst_15 : f32 to vector<8x32xf32>
    %28 = arith.subf %27, %26 : vector<8x32xf32>
    %29 = math.exp %28 : vector<8x32xf32>
    %cst_16 = arith.constant 1.000000e+00 : f32
    %30 = vector.broadcast %cst_16 : f32 to vector<8x32xf32>
    %31 = arith.addf %30, %29 : vector<8x32xf32>
    %32 = tpu.reciprocal %31 {approx = true} : vector<8x32xf32> -> vector<8x32xf32>
    %33 = arith.mulf %26, %32 : vector<8x32xf32>
    %c0_17 = arith.constant 0 : index
    %c0_18 = arith.constant 0 : index
    %34 = vector.load %arg6[%c0_17, %c0_18] : memref<32x128xf32, #tpu.memory_space<vmem>>, vector<32x128xf32>
    %cst_19 = arith.constant dense<0.000000e+00> : vector<8x128xf32>
    %35 = tpu.matmul %33, %34, %cst_19 {dimension_numbers = #tpu.dot_dimension_numbers<[1], [0], [0], [1], [0, 0, 1, 1], [], []>} : vector<8x32xf32>, vector<32x128xf32>, vector<8x128xf32> -> vector<8x128xf32>
    %c0_20 = arith.constant 0 : index
    %c0_21 = arith.constant 0 : index
    %36 = vector.load %arg7[%c0_20, %c0_21] : memref<1x128xf32, #tpu.memory_space<vmem>>, vector<1x128xf32>
    %37 = vector.broadcast %36 : vector<1x128xf32> to vector<8x128xf32>
    %38 = arith.addf %35, %37 : vector<8x128xf32>
    %cst_22 = arith.constant dense<0xFF800000> : vector<8xf32>
    %39 = vector.multi_reduction <maximumf>, %38, %cst_22 [1] : vector<8x128xf32> to vector<8xf32>
    %40 = vector.shape_cast %39 : vector<8xf32> to vector<8x1xf32>
    %41 = vector.broadcast %40 : vector<8x1xf32> to vector<8x128xf32>
    %42 = arith.subf %38, %41 : vector<8x128xf32>
    %43 = math.exp %42 : vector<8x128xf32>
    %cst_23 = arith.constant dense<0.000000e+00> : vector<8xf32>
    %44 = vector.multi_reduction <add>, %43, %cst_23 [1] : vector<8x128xf32> to vector<8xf32>
    %45 = vector.shape_cast %44 : vector<8xf32> to vector<8x1xf32>
    %46 = tpu.reciprocal %45 {approx = true} : vector<8x1xf32> -> vector<8x1xf32>
    %47 = vector.broadcast %46 : vector<8x1xf32> to vector<8x128xf32>
    %48 = arith.mulf %43, %47 : vector<8x128xf32>
    %c0_24 = arith.constant 0 : index
    %c0_25 = arith.constant 0 : index
    %49 = vector.load %arg8[%c0_24, %c0_25] : memref<8x128xf32, #tpu.memory_space<vmem>>, vector<8x128xf32>
    tpu.vector_store %arg8[%c0_24, %c0_25], %48 {strides = array<i32>} : memref<8x128xf32, #tpu.memory_space<vmem>>, vector<8x128xf32>,
    return
  }
  func.func @transform_0(%arg0: i32) -> (i32, i32) {
    %c0_i32 = arith.constant 0 : i32
    %c0_i32_0 = arith.constant 0 : i32
    return %arg0, %c0_i32 : i32, i32
  }
  func.func @transform_1(%arg0: i32) -> (i32, i32) {
    %c0_i32 = arith.constant 0 : i32
    %c0_i32_0 = arith.constant 0 : i32
    %c0_i32_1 = arith.constant 0 : i32
    return %c0_i32, %c0_i32_0 : i32, i32
  }
  func.func @transform_2(%arg0: i32) -> (i32, i32) {
    %c0_i32 = arith.constant 0 : i32
    %c0_i32_0 = arith.constant 0 : i32
    %c0_i32_1 = arith.constant 0 : i32
    return %c0_i32, %c0_i32_0 : i32, i32
  }
  func.func @transform_3(%arg0: i32) -> (i32, i32, i32) {
    %c0_i32 = arith.constant 0 : i32
    %c0_i32_0 = arith.constant 0 : i32
    %c0_i32_1 = arith.constant 0 : i32
    %c0_i32_2 = arith.constant 0 : i32
    return %c0_i32, %c0_i32_0, %c0_i32_1 : i32, i32, i32
  }
  func.func @transform_4(%arg0: i32) -> (i32, i32, i32) {
    %c0_i32 = arith.constant 0 : i32
    %c0_i32_0 = arith.constant 0 : i32
    %c0_i32_1 = arith.constant 0 : i32
    %c0_i32_2 = arith.constant 0 : i32
    return %c0_i32, %c0_i32_0, %c0_i32_1 : i32, i32, i32
  }
  func.func @transform_5(%arg0: i32) -> (i32, i32) {
    %c0_i32 = arith.constant 0 : i32
    %c0_i32_0 = arith.constant 0 : i32
    %c0_i32_1 = arith.constant 0 : i32
    return %c0_i32, %c0_i32_0 : i32, i32
  }
  func.func @transform_6(%arg0: i32) -> (i32, i32) {
    %c0_i32 = arith.constant 0 : i32
    %c0_i32_0 = arith.constant 0 : i32
    %c0_i32_1 = arith.constant 0 : i32
    return %c0_i32, %c0_i32_0 : i32, i32
  }
  func.func @transform_7(%arg0: i32) -> (i32, i32) {
    %c0_i32 = arith.constant 0 : i32
    %c0_i32_0 = arith.constant 0 : i32
    return %arg0, %c0_i32 : i32, i32
  }
}

</mosaic_0001>

<llo_original>
// kernel: tpu_custom_call.1
$region0: #{tpu_custom_call.1}
  #allocation0 [shape = 'u32[]', space=smem, size = 0x4, offset = 0x4, fixed_abs, tag = 'smem constant byte address 0x4 - core index']
  #allocation1 [shape = 'u32[144,128]{1,0:T(1,128)}', space=vmem, size = 0x12000, scoped, tag = 'internal scratch']
  %s0 = inlined_call_operand.hbm [shape: f32[8,6], index: 0, kind: input, shape index: {}]
  %s1 = inlined_call_operand.hbm [shape: f32[6,32], index: 1, kind: input, shape index: {}]
  %s2 = inlined_call_operand.vmem [shape: f32[1,32], index: 2, kind: input, shape index: {}]
  %s3 = inlined_call_operand.hbm [shape: f32[1,32,32], index: 3, kind: input, shape index: {}]
  %s4 = inlined_call_operand.vmem [shape: f32[1,1,32], index: 4, kind: input, shape index: {}]
  %s5 = inlined_call_operand.hbm [shape: f32[32,128], index: 5, kind: input, shape index: {}]
  %s6 = inlined_call_operand.vmem [shape: f32[1,128], index: 6, kind: input, shape index: {}]
  %s7 = inlined_call_operand.hbm [shape: f32[8,128], index: 7, kind: output, shape index: {}]
  %s8 = sld [smem:[#allocation0]]
  $region54: #{tpu_custom_call.1} parent=0
    _
  %s10 = ssub.s32 1, %s8
  %s11 = scalar_select 0, %s10, %s8
  $region1: #{tpu_custom_call.1} parent=0
    #allocation2 [shape = 'u8[4096]{0}', space=vmem, size = 0x1000, scoped, tag = 'input window, operand 0, single buffered']
    #allocation3 [shape = 's32[1]{0}', space=sflag, size = 0x4, scoped, tag = 'scoped memory for tpu_custom_call.1']
    #allocation4 [shape = 's32[1]{0}', space=sflag, size = 0x4, scoped, tag = 'scoped memory for tpu_custom_call.1']
    #allocation5 [shape = 'u8[4096]{0}', space=vmem, size = 0x1000, scoped, tag = 'input window, operand 1, single buffered']
    #allocation6 [shape = 's32[1]{0}', space=sflag, size = 0x4, scoped, tag = 'scoped memory for tpu_custom_call.1']
    #allocation7 [shape = 'u8[16384]{0}', space=vmem, size = 0x4000, scoped, tag = 'input window, operand 3, single buffered']
    #allocation8 [shape = 'u8[16384]{0}', space=vmem, size = 0x4000, scoped, tag = 'input window, operand 5, single buffered']
    #allocation9 [shape = 's32[1]{0}', space=sflag, size = 0x4, scoped, tag = 'scoped memory for tpu_custom_call.1']
    #allocation10 [shape = 'u8[4096]{0}', space=vmem, size = 0x1000, scoped, tag = 'output window, operand 0, single buffered']
    %12 = vsyncpa [#allocation3], 0
    %13 = vsyncpa [#allocation6], 0
    %14 = vsyncpa [#allocation9], 0
    %15 = vsyncpa [#allocation4], 0
    // Predicated region
    $region2: #{tpu_custom_call.1} parent=1 // pred_check
      _
    $region3: #{tpu_custom_call.1} parent=1 // pred_check_branch
      %17 = sbr.rel (0) target = $region5
    $region4: #{tpu_custom_call.1} parent=1 // pred_region
      %s19 = ssub.s32 128, 128
      %20 = vsyncadd [#allocation3], %s19
      %s22 = sshll.u32 [#allocation2], 4
      %s23 = int_to_ptr.vmem [resolvable:$true] %s22
      %25 = dma.hbm_to_vmem [thread:$0]  %s0, 128, %s23, [#allocation3]
    $region5: #{tpu_custom_call.1} parent=1 // pred_fallthru
      _
    // Predicated region
    $region6: #{tpu_custom_call.1} parent=1 // pred_check
      _
    $region7: #{tpu_custom_call.1} parent=1 // pred_check_branch
      %27 = sbr.rel (0) target = $region9
    $region8: #{tpu_custom_call.1} parent=1 // pred_region
      %s29 = ssub.s32 128, 128
      %30 = vsyncadd [#allocation6], %s29
      %s32 = sshll.u32 [#allocation5], 4
      %s33 = int_to_ptr.vmem [resolvable:$true] %s32
      %35 = dma.hbm_to_vmem [thread:$0]  %s1, 128, %s33, [#allocation6]
    $region9: #{tpu_custom_call.1} parent=1 // pred_fallthru
      _
    // Predicated region
    $region10: #{tpu_custom_call.1} parent=1 // pred_check
      _
    $region11: #{tpu_custom_call.1} parent=1 // pred_check_branch
      %37 = sbr.rel (0) target = $region13
    $region12: #{tpu_custom_call.1} parent=1 // pred_region
      _
    $region13: #{tpu_custom_call.1} parent=1 // pred_fallthru
      _
    // Predicated region
    $region14: #{tpu_custom_call.1} parent=1 // pred_check
      _
    $region15: #{tpu_custom_call.1} parent=1 // pred_check_branch
      %39 = sbr.rel (0) target = $region17
    $region16: #{tpu_custom_call.1} parent=1 // pred_region
      %s41 = ssub.s32 512, 512
      %42 = vsyncadd [#allocation6], %s41
      %s43 = sshll.u32 [#allocation7], 4
      %s44 = int_to_ptr.vmem [resolvable:$true] %s43
      %49 = dma.hbm_to_vmem [thread:$0]  %s3, 512, %s44, [#allocation6], 128, 128, 8
    $region17: #{tpu_custom_call.1} parent=1 // pred_fallthru
      _
    // Predicated region
    $region18: #{tpu_custom_call.1} parent=1 // pred_check
      _
    $region19: #{tpu_custom_call.1} parent=1 // pred_check_branch
      %51 = sbr.rel (0) target = $region21
    $region20: #{tpu_custom_call.1} parent=1 // pred_region
      _
    $region21: #{tpu_custom_call.1} parent=1 // pred_fallthru
      _
    // Predicated region
    $region22: #{tpu_custom_call.1} parent=1 // pred_check
      _
    $region23: #{tpu_custom_call.1} parent=1 // pred_check_branch
      %53 = sbr.rel (0) target = $region25
    $region24: #{tpu_custom_call.1} parent=1 // pred_region
      %s55 = ssub.s32 512, 512
      %56 = vsyncadd [#allocation9], %s55
      %s57 = sshll.u32 [#allocation8], 4
      %s58 = int_to_ptr.vmem [resolvable:$true] %s57
      %63 = dma.hbm_to_vmem [thread:$0]  %s5, 512, %s58, [#allocation9], 128, 128, 8
    $region25: #{tpu_custom_call.1} parent=1 // pred_fallthru
      _
    // Predicated region
    $region26: #{tpu_custom_call.1} parent=1 // pred_check
      _
    $region27: #{tpu_custom_call.1} parent=1 // pred_check_branch
      %65 = sbr.rel (0) target = $region29
    $region28: #{tpu_custom_call.1} parent=1 // pred_region
      _
    $region29: #{tpu_custom_call.1} parent=1 // pred_fallthru
      _
    // Predicated region
    $region30: #{tpu_custom_call.1} parent=1 // pred_check
      _
    $region31: #{tpu_custom_call.1} parent=1 // pred_check_branch
      %67 = sbr.rel (0) target = $region33
    $region32: #{tpu_custom_call.1} parent=1 // pred_region
      %68 = dma.done [#allocation3], 128
    $region33: #{tpu_custom_call.1} parent=1 // pred_fallthru
      _
    // Predicated region
    $region34: #{tpu_custom_call.1} parent=1 // pred_check
      _
    $region35: #{tpu_custom_call.1} parent=1 // pred_check_branch
      %70 = sbr.rel (0) target = $region37
    $region36: #{tpu_custom_call.1} parent=1 // pred_region
      %71 = dma.done [#allocation6], 128
    $region37: #{tpu_custom_call.1} parent=1 // pred_fallthru
      _
    // Predicated region
    $region38: #{tpu_custom_call.1} parent=1 // pred_check
      _
    $region39: #{tpu_custom_call.1} parent=1 // pred_check_branch
      %73 = sbr.rel (0) target = $region41
    $region40: #{tpu_custom_call.1} parent=1 // pred_region
      %74 = dma.done [#allocation6], 512
    $region41: #{tpu_custom_call.1} parent=1 // pred_fallthru
      _
    // Predicated region
    $region42: #{tpu_custom_call.1} parent=1 // pred_check
      _
    $region43: #{tpu_custom_call.1} parent=1 // pred_check_branch
      %76 = sbr.rel (0) target = $region45
    $region44: #{tpu_custom_call.1} parent=1 // pred_region
      %77 = dma.done [#allocation9], 512
    $region45: #{tpu_custom_call.1} parent=1 // pred_fallthru
      _
    %v78 = vld [vmem:[#allocation2] sm:$0xff]
    %v79 = vlaneseq
    %v80 = vand.u32 %v79, 127
    %vm81 = vcmp.ge.s32.totalorder %v80, 2
    %v82 = vsel %vm81, %v78, 1.0
    %v83 = vlog2.pop %v82
    %v84 = vmul.f32 %v83, 0.6931472
    %v85 = vsel %vm81, %v84, %v78
    %v86 = vld [vmem:[#allocation5] sm:$0x3f]
    %v87 = vld [vmem:[%s2] sm:$0x1]
    %v89 = vlaneseq
    %v90 = vshrl.u32 %v89, 7
    %v91 = vsub.s32 0, %v90
    %v92 = vrot.slane %v87, %v91
    %vm94 = vcmask 48128
    %v96 = vsel %vm94, %v85, 0
    %vm98 = vcmask 1045504
    %v100 = vsel %vm98, %v86, 0
    %102 = vmatprep.subr.mxu0 0.0
    %103 = vmatpush1.msra.mxu0 %v100
    %104 = vmatprep.subr.mxu0 0.0
    %105 = vmatpush1.msra.mxu0 0.0
    %106 = vmatprep.subr.mxu0 0.0
    %107 = vmatpush1.msra.mxu0 0.0
    %108 = vmatprep.subr.mxu0 0.0
    %109 = vmatpush1.msra.mxu0 0.0
    %110 = vmatprep.subr.mxu0 0.0
    %111 = vmatpush1.msra.mxu0 0.0
    %112 = vmatprep.subr.mxu0 0.0
    %113 = vmatpush1.msra.mxu0 0.0
    %114 = vmatprep.subr.mxu0 0.0
    %115 = vmatpush1.msra.mxu0 0.0
    %116 = vmatprep.subr.mxu0 0.0
    %117 = vmatpush1.msra.mxu0 0.0
    %118 = vmatprep.subr.mxu0 0.0
    %119 = vmatpush1.msra.mxu0 0.0
    %120 = vmatprep.subr.mxu0 0.0
    %121 = vmatpush1.msra.mxu0 0.0
    %122 = vmatprep.subr.mxu0 0.0
    %123 = vmatpush1.msra.mxu0 0.0
    %124 = vmatprep.subr.mxu0 0.0
    %125 = vmatpush1.msra.mxu0 0.0
    %126 = vmatprep.subr.mxu0 0.0
    %127 = vmatpush1.msra.mxu0 0.0
    %128 = vmatprep.subr.mxu0 0.0
    %129 = vmatpush1.msra.mxu0 0.0
    %130 = vmatprep.subr.mxu0 0.0
    %131 = vmatpush1.msra.mxu0 0.0
    %132 = vmatprep.subr.mxu0 0.0
    %133 = vmatpush1.msra.mxu0 0.0
    %134 = vmatprep.subr.mxu0 0.0
    %135 = vmatpush1.msra.mxu0 0.0
    %136 = vmatprep.subr.mxu0 0.0
    %137 = vmatpush1.msra.mxu0 0.0
    %138 = vmatprep.subr.mxu0 0.0
    %139 = vmatpush1.msra.mxu0 0.0
    %140 = vmatprep.subr.mxu0 0.0
    %141 = vmatpush1.msra.mxu0 0.0
    %142 = vmatprep.subr.mxu0 0.0
    %143 = vmatpush1.msra.mxu0 0.0
    %144 = vmatprep.subr.mxu0 0.0
    %145 = vmatpush1.msra.mxu0 0.0
    %146 = vmatprep.subr.mxu0 0.0
    %147 = vmatpush1.msra.mxu0 0.0
    %148 = vmatprep.subr.mxu0 0.0
    %149 = vmatpush1.msra.mxu0 0.0
    %150 = vmatprep.subr.mxu0 0.0
    %151 = vmatpush1.msra.mxu0 0.0
    %152 = vmatprep.subr.mxu0 0.0
    %153 = vmatpush1.msra.mxu0 0.0
    %154 = vmatprep.subr.mxu0 0.0
    %155 = vmatpush1.msra.mxu0 0.0
    %156 = vmatprep.subr.mxu0 0.0
    %157 = vmatpush1.msra.mxu0 0.0
    %158 = vmatprep.subr.mxu0 0.0
    %159 = vmatpush1.msra.mxu0 0.0
    %160 = vmatprep.subr.mxu0 0.0
    %161 = vmatpush1.msra.mxu0 0.0
    %162 = vmatprep.subr.mxu0 0.0
    %163 = vmatpush1.msra.mxu0 0.0
    %164 = vmatprep.subr.mxu0 0.0
    %165 = vmatpush1.msra.mxu0 0.0
    %166 = vmatprep.mubr.f32.mxu0 0.0
    %167 = vmatmul.mubr.f32.gmra.mrb[0].mxu0 %v96
    %v168 = vpop.f32.mrb[0].mxu0
    %v169 = vadd.f32 %v92, %v168
    %v170 = vpop.f32.mrb[0].mxu0
    %171 = vdwg.mxu0
    %v172 = vsub.f32 0.0, %v169
    %v173 = vmul.f32 %v172, 1.442695
    %v174 = vpow.pop %v173
    %v175 = vadd.f32 %v174, 1.0
    %v176 = vrcp.pop %v175
    %v177 = vmul.f32 %v169, %v176
    %v178 = vld [vmem:[#allocation7] sm:$0xff]
    %v179 = vld [vmem:[#allocation7 + $0x8] sm:$0xff]
    %v180 = vld [vmem:[#allocation7 + $0x10] sm:$0xff]
    %v181 = vld [vmem:[#allocation7 + $0x18] sm:$0xff]
    %v182 = vld [vmem:[%s4] sm:$0x1]
    %v184 = vlaneseq
    %v185 = vshrl.u32 %v184, 7
    %v186 = vsub.s32 0, %v185
    %v187 = vrot.slane %v182, %v186
    %vm189 = vcmask 261120
    %v191 = vsel %vm189, %v177, 0
    %193 = vmatprep.subr.mxu0 0.0
    %194 = vmatpush1.msra.mxu0 %v178
    %195 = vmatprep.subr.mxu0 0.0
    %196 = vmatpush1.msra.mxu0 %v179
    %197 = vmatprep.subr.mxu0 0.0
    %198 = vmatpush1.msra.mxu0 %v180
    %199 = vmatprep.subr.mxu0 0.0
    %200 = vmatpush1.msra.mxu0 %v181
    %201 = vmatprep.subr.mxu0 0.0
    %202 = vmatpush1.msra.mxu0 0.0
    %203 = vmatprep.subr.mxu0 0.0
    %204 = vmatpush1.msra.mxu0 0.0
    %205 = vmatprep.subr.mxu0 0.0
    %206 = vmatpush1.msra.mxu0 0.0
    %207 = vmatprep.subr.mxu0 0.0
    %208 = vmatpush1.msra.mxu0 0.0
    %209 = vmatprep.subr.mxu0 0.0
    %210 = vmatpush1.msra.mxu0 0.0
    %211 = vmatprep.subr.mxu0 0.0
    %212 = vmatpush1.msra.mxu0 0.0
    %213 = vmatprep.subr.mxu0 0.0
    %214 = vmatpush1.msra.mxu0 0.0
    %215 = vmatprep.subr.mxu0 0.0
    %216 = vmatpush1.msra.mxu0 0.0
    %217 = vmatprep.subr.mxu0 0.0
    %218 = vmatpush1.msra.mxu0 0.0
    %219 = vmatprep.subr.mxu0 0.0
    %220 = vmatpush1.msra.mxu0 0.0
    %221 = vmatprep.subr.mxu0 0.0
    %222 = vmatpush1.msra.mxu0 0.0
    %223 = vmatprep.subr.mxu0 0.0
    %224 = vmatpush1.msra.mxu0 0.0
    %225 = vmatprep.subr.mxu0 0.0
    %226 = vmatpush1.msra.mxu0 0.0
    %227 = vmatprep.subr.mxu0 0.0
    %228 = vmatpush1.msra.mxu0 0.0
    %229 = vmatprep.subr.mxu0 0.0
    %230 = vmatpush1.msra.mxu0 0.0
    %231 = vmatprep.subr.mxu0 0.0
    %232 = vmatpush1.msra.mxu0 0.0
    %233 = vmatprep.subr.mxu0 0.0
    %234 = vmatpush1.msra.mxu0 0.0
    %235 = vmatprep.subr.mxu0 0.0
    %236 = vmatpush1.msra.mxu0 0.0
    %237 = vmatprep.subr.mxu0 0.0
    %238 = vmatpush1.msra.mxu0 0.0
    %239 = vmatprep.subr.mxu0 0.0
    %240 = vmatpush1.msra.mxu0 0.0
    %241 = vmatprep.subr.mxu0 0.0
    %242 = vmatpush1.msra.mxu0 0.0
    %243 = vmatprep.subr.mxu0 0.0
    %244 = vmatpush1.msra.mxu0 0.0
    %245 = vmatprep.subr.mxu0 0.0
    %246 = vmatpush1.msra.mxu0 0.0
    %247 = vmatprep.subr.mxu0 0.0
    %248 = vmatpush1.msra.mxu0 0.0
    %249 = vmatprep.subr.mxu0 0.0
    %250 = vmatpush1.msra.mxu0 0.0
    %251 = vmatprep.subr.mxu0 0.0
    %252 = vmatpush1.msra.mxu0 0.0
    %253 = vmatprep.subr.mxu0 0.0
    %254 = vmatpush1.msra.mxu0 0.0
    %255 = vmatprep.subr.mxu0 0.0
    %256 = vmatpush1.msra.mxu0 0.0
    %257 = vmatprep.mubr.f32.mxu0 0.0
    %258 = vmatmul.mubr.f32.gmra.mrb[0].mxu0 %v191
    %v259 = vpop.f32.mrb[0].mxu0
    %v260 = vadd.f32 %v187, %v259
    %v261 = vpop.f32.mrb[0].mxu0
    %262 = vdwg.mxu0
    %v263 = vsub.f32 0.0, %v260
    %v264 = vmul.f32 %v263, 1.442695
    %v265 = vpow.pop %v264
    %v266 = vadd.f32 %v265, 1.0
    %v267 = vrcp.pop %v266
    %v268 = vmul.f32 %v260, %v267
    %v269 = vld [vmem:[#allocation8] sm:$0xff]
    %v270 = vld [vmem:[#allocation8 + $0x8] sm:$0xff]
    %v271 = vld [vmem:[#allocation8 + $0x10] sm:$0xff]
    %v272 = vld [vmem:[#allocation8 + $0x18] sm:$0xff]
    %v273 = vld [vmem:[%s6] sm:$0x1]
    %v275 = vlaneseq
    %v276 = vshrl.u32 %v275, 7
    %v277 = vsub.s32 0, %v276
    %v278 = vrot.slane %v273, %v277
    %v281 = vsel %vm189, %v268, 0
    %283 = vmatprep.subr.mxu0 0.0
    %284 = vmatpush1.msra.mxu0 %v269
    %285 = vmatprep.subr.mxu0 0.0
    %286 = vmatpush1.msra.mxu0 %v270
    %287 = vmatprep.subr.mxu0 0.0
    %288 = vmatpush1.msra.mxu0 %v271
    %289 = vmatprep.subr.mxu0 0.0
    %290 = vmatpush1.msra.mxu0 %v272
    %291 = vmatprep.subr.mxu0 0.0
    %292 = vmatpush1.msra.mxu0 0.0
    %293 = vmatprep.subr.mxu0 0.0
    %294 = vmatpush1.msra.mxu0 0.0
    %295 = vmatprep.subr.mxu0 0.0
    %296 = vmatpush1.msra.mxu0 0.0
    %297 = vmatprep.subr.mxu0 0.0
    %298 = vmatpush1.msra.mxu0 0.0
    %299 = vmatprep.subr.mxu0 0.0
    %300 = vmatpush1.msra.mxu0 0.0
    %301 = vmatprep.subr.mxu0 0.0
    %302 = vmatpush1.msra.mxu0 0.0
    %303 = vmatprep.subr.mxu0 0.0
    %304 = vmatpush1.msra.mxu0 0.0
    %305 = vmatprep.subr.mxu0 0.0
    %306 = vmatpush1.msra.mxu0 0.0
    %307 = vmatprep.subr.mxu0 0.0
    %308 = vmatpush1.msra.mxu0 0.0
    %309 = vmatprep.subr.mxu0 0.0
    %310 = vmatpush1.msra.mxu0 0.0
    %311 = vmatprep.subr.mxu0 0.0
    %312 = vmatpush1.msra.mxu0 0.0
    %313 = vmatprep.subr.mxu0 0.0
    %314 = vmatpush1.msra.mxu0 0.0
    %315 = vmatprep.subr.mxu0 0.0
    %316 = vmatpush1.msra.mxu0 0.0
    %317 = vmatprep.subr.mxu0 0.0
    %318 = vmatpush1.msra.mxu0 0.0
    %319 = vmatprep.subr.mxu0 0.0
    %320 = vmatpush1.msra.mxu0 0.0
    %321 = vmatprep.subr.mxu0 0.0
    %322 = vmatpush1.msra.mxu0 0.0
    %323 = vmatprep.subr.mxu0 0.0
    %324 = vmatpush1.msra.mxu0 0.0
    %325 = vmatprep.subr.mxu0 0.0
    %326 = vmatpush1.msra.mxu0 0.0
    %327 = vmatprep.subr.mxu0 0.0
    %328 = vmatpush1.msra.mxu0 0.0
    %329 = vmatprep.subr.mxu0 0.0
    %330 = vmatpush1.msra.mxu0 0.0
    %331 = vmatprep.subr.mxu0 0.0
    %332 = vmatpush1.msra.mxu0 0.0
    %333 = vmatprep.subr.mxu0 0.0
    %334 = vmatpush1.msra.mxu0 0.0
    %335 = vmatprep.subr.mxu0 0.0
    %336 = vmatpush1.msra.mxu0 0.0
    %337 = vmatprep.subr.mxu0 0.0
    %338 = vmatpush1.msra.mxu0 0.0
    %339 = vmatprep.subr.mxu0 0.0
    %340 = vmatpush1.msra.mxu0 0.0
    %341 = vmatprep.subr.mxu0 0.0
    %342 = vmatpush1.msra.mxu0 0.0
    %343 = vmatprep.subr.mxu0 0.0
    %344 = vmatpush1.msra.mxu0 0.0
    %345 = vmatprep.subr.mxu0 0.0
    %346 = vmatpush1.msra.mxu0 0.0
    %347 = vmatprep.mubr.f32.mxu0 0.0
    %348 = vmatmul.mubr.f32.gmra.mrb[0].mxu0 %v281
    %v349 = vpop.f32.mrb[0].mxu0
    %v350 = vadd.f32 %v278, %v349
    %v351 = vpop.f32.mrb[0].mxu0
    %352 = vdwg.mxu0
    %353 = vmax.xlane.f32.xlu0 %v350
    %v354 = vpop.xlane.xlu0 %353
    %v355 = vsub.f32 %v350, %v354
    %v356 = vmul.f32 %v355, 1.442695
    %v357 = vpow.pop %v356
    %358 = vadd.xlane.f32.xlu0 %v357
    %v359 = vpop.xlane.xlu0 %358
    %v360 = vrcp.pop %v359
    %v361 = vmul.f32 %v357, %v360
    %362 = vst [vmem:[#allocation10] sm:$0xff] %v361
    // Predicated region
    $region46: #{tpu_custom_call.1} parent=1 // pred_check
      _
    $region47: #{tpu_custom_call.1} parent=1 // pred_check_branch
      %364 = sbr.rel (0) target = $region49
    $region48: #{tpu_custom_call.1} parent=1 // pred_region
      %s366 = ssub.s32 128, 128
      %367 = vsyncadd [#allocation4], %s366
      %s369 = sshll.u32 [#allocation10], 4
      %s370 = int_to_ptr.vmem [resolvable:$true] %s369
      %372 = dma.vmem_to_hbm [thread:$0]  %s370, 128, %s7, [#allocation4]
    $region49: #{tpu_custom_call.1} parent=1 // pred_fallthru
      _
    // Predicated region
    $region50: #{tpu_custom_call.1} parent=1 // pred_check
      _
    $region51: #{tpu_custom_call.1} parent=1 // pred_check_branch
      %374 = sbr.rel (0) target = $region53
    $region52: #{tpu_custom_call.1} parent=1 // pred_region
      %375 = dma.done [#allocation4], 128
    $region53: #{tpu_custom_call.1} parent=1 // pred_fallthru
      _
    %376 = vsyncpa [#allocation3], 1
    %377 = vsyncpa [#allocation6], 1
    %378 = vsyncpa [#allocation9], 1
    %379 = vsyncpa [#allocation4], 1

</llo_original>
